<compile_context>
chip_gen: v7x
topology: tpu7x:2x2x1
jax: 0.10.0
libtpu: 0.0.40
codegen_flags: <defaults>
</compile_context>

<pallas_src>
import functools

import jax
import jax.numpy as jnp
from jax.experimental import pallas as pl
from jax.experimental.pallas import tpu as pltpu

_SUBLANE = 8
_LANE = 128
_INT32_MAX = 2**31 - 1


def _round_up(x: int, m: int) -> int:
    return (x + m - 1) // m * m


def _tpu_config():
    """Per-generation budgets: block bytes, scoped-VMEM cap, min batch tiles."""
    kind = ""
    try:
        kind = jax.devices()[0].device_kind.lower()
    except Exception:
        pass
    if "v5" in kind or "v6" in kind:
        # v5e/v5p/v6e: 128 MiB VMEM, single TensorCore -> big blocks, few steps.
        return {"block_budget": 16 << 20, "vmem_cap": 64 << 20,
                "min_batch_tiles": 1}
    # v7x (or unknown, conservative): 64 MiB VMEM per TC, 2 TCs -> smaller
    # blocks, capped scoped VMEM, ensure the parallel batch axis splits.
    return {"block_budget": 12 << 20, "vmem_cap": 48 << 20,
            "min_batch_tiles": 2}


def _choose_tiles(B: int, C: int, itemsize: int, block_budget: int,
                  min_batch_tiles: int):
    """Pick (TB, TC): TB == B or multiple of 8; TC == C or multiple of 128."""
    tb_cap = 512
    if min_batch_tiles > 1 and B > _SUBLANE:
        # Make sure the "parallel" batch axis has >= min_batch_tiles tiles.
        tb_cap = min(tb_cap,
                     max(_SUBLANE, _round_up(pl.cdiv(B, min_batch_tiles),
                                             _SUBLANE)))
    TB = B if B <= tb_cap else tb_cap
    if TB * C * itemsize <= block_budget:
        return TB, C          # full class dim in one tile -> no in-kernel mask
    # Class dim must be tiled: keep TB modest so TC (multiple of 128) is large.
    if TB > 256:
        TB = 256
    TC = max(_LANE, (block_budget // (TB * itemsize)) // _LANE * _LANE)
    TC = min(TC, _round_up(C, _LANE))
    return TB, TC


def _metric_kernel(logits_ref, labels_ref, out_ref, m_ref, idx_ref, *,
                   num_classes, block_c, mask_last):
    kc = pl.program_id(1)
    nkc = pl.num_programs(1)

    @pl.when(kc == 0)
    def _init():
        m_ref[...] = jnp.full_like(m_ref, -jnp.inf)
        idx_ref[...] = jnp.full_like(idx_ref, _INT32_MAX)

    # Native dtype: no full-tile f32 upcast (bf16 is native on v6e/v7x VPUs).
    logits = logits_ref[...]                                     # (TB, TC)
    TB, TC = logits.shape
    col = jax.lax.broadcasted_iota(jnp.int32, (TB, TC), 1)       # local 0..TC-1

    def _merge(vals, valid):
        """Fold one class tile into the running (max, first-argmax) scratch."""
        tile_max = jnp.max(vals, axis=1, keepdims=True)          # (TB, 1)
        is_max = vals == tile_max
        if valid is not None:
            is_max = jnp.logical_and(is_max, valid)
        local_idx = jnp.min(jnp.where(is_max, col, _INT32_MAX),
                            axis=1, keepdims=True)               # (TB, 1)
        # Globalize the column index on the reduced (TB,1) tile only; guard the
        # all-NaN-row sentinel against int32 overflow.
        tile_idx = jnp.where(local_idx == _INT32_MAX, _INT32_MAX,
                             local_idx + kc * block_c)
        tile_max = tile_max.astype(m_ref.dtype)                  # exact widen

        run_max = m_ref[...]
        run_idx = idx_ref[...]
        better = tile_max > run_max
        equal = tile_max == run_max
        m_ref[...] = jnp.maximum(run_max, tile_max)
        # First-occurrence tie-break across class tiles: min index on equal max.
        idx_ref[...] = jnp.where(
            better, tile_idx,
            jnp.where(equal, jnp.minimum(run_idx, tile_idx), run_idx))

    if mask_last:
        # Only the final class tile can contain out-of-bounds (garbage) columns;
        # only it pays for the iota-compare/select mask.
        is_last = kc == nkc - 1

        @pl.when(is_last)
        def _masked():
            valid = col < (num_classes - kc * block_c)
            fill = jnp.array(-jnp.inf, dtype=logits.dtype)
            _merge(jnp.where(valid, logits, fill), valid)

        @pl.when(jnp.logical_not(is_last))
        def _unmasked():
            _merge(logits, None)
    else:
        _merge(logits, None)

    @pl.when(kc == nkc - 1)
    def _finalize():
        out_ref[...] = (idx_ref[...] == labels_ref[...]).astype(jnp.float32)


def metric_classification(output: jax.Array, y: jax.Array, *,
                          min_pallas_elems: int = 1 << 20,
                          block_b: int | None = None,
                          block_c: int | None = None) -> jax.Array:
    """output: (B, C) logits; y: (B,) int labels -> (B,) float32 correctness."""
    if output.ndim != 2:
        raise ValueError(f"expected (B, C) logits, got {output.shape}")
    B, C = output.shape
    labels = y.astype(jnp.int32)          # process_labels treated as identity
    if not jnp.issubdtype(output.dtype, jnp.floating):
        output = output.astype(jnp.float32)

    # Tiny problems: pallas_call overhead dwarfs the work; let XLA fuse it.
    if B * C < min_pallas_elems:
        return (jnp.argmax(output, axis=1) == labels).astype(jnp.float32)

    itemsize = jnp.dtype(output.dtype).itemsize
    cfg = _tpu_config()
    TB, TC = _choose_tiles(B, C, itemsize, cfg["block_budget"],
                           cfg["min_batch_tiles"])
    if block_b is not None:
        if block_b != B and block_b % _SUBLANE:
            raise ValueError("block_b must equal B or be a multiple of 8")
        TB = block_b
    if block_c is not None:
        if block_c != C and block_c % _LANE:
            raise ValueError("block_c must equal C or be a multiple of 128")
        TC = block_c

    # No padding: ragged edges handled by Pallas (dropped OOB output writes)
    # plus in-kernel masking of the final class tile when needed.
    grid = (pl.cdiv(B, TB), pl.cdiv(C, TC))   # reduction (class) axis innermost
    mask_last = (C % TC) != 0

    block_bytes = TB * TC * itemsize
    vmem_limit = int(min(cfg["vmem_cap"],
                         max(32 << 20, 3 * block_bytes + (2 << 20))))

    labels_col = labels.reshape(B, 1)

    kernel = functools.partial(_metric_kernel, num_classes=C, block_c=TC,
                               mask_last=mask_last)
    out = pl.pallas_call(
        kernel,
        out_shape=jax.ShapeDtypeStruct((B, 1), jnp.float32),
        grid_spec=pltpu.PrefetchScalarGridSpec(
            num_scalar_prefetch=0,
            grid=grid,
            in_specs=[
                pl.BlockSpec((TB, TC), lambda i, kc: (i, kc)),
                pl.BlockSpec((TB, 1), lambda i, kc: (i, 0)),
            ],
            out_specs=pl.BlockSpec((TB, 1), lambda i, kc: (i, 0)),
            scratch_shapes=[
                pltpu.VMEM((TB, 1), jnp.float32),   # running max (exact widen)
                pltpu.VMEM((TB, 1), jnp.int32),     # running first-argmax
            ],
        ),
        compiler_params=pltpu.CompilerParams(
            dimension_semantics=("parallel", "arbitrary"),
            vmem_limit_bytes=vmem_limit,
        ),
        cost_estimate=pl.CostEstimate(
            flops=2 * B * C,
            transcendentals=0,
            bytes_accessed=B * C * itemsize + 8 * B,
        ),
    )(output, labels_col)
    return out.reshape(B)


if __name__ == "__main__":
    key = jax.random.PRNGKey(0)
    k1, k2, k3, k4, k5 = jax.random.split(key, 5)

    # --- Test 1: small shapes (batch=8, classes=16), single tile, f32. ---
    B, C = 8, 16
    logits = jax.random.normal(k1, (B, C), dtype=jnp.float32)
    y = jax.random.randint(k2, (B,), 0, C, dtype=jnp.int32)

    acc = metric_classification(logits, y, min_pallas_elems=0)  # force Pallas
    acc = jax.block_until_ready(acc)
    ref = (jnp.argmax(logits, axis=1) == y).astype(jnp.float32)
    assert acc.shape == (B,) and acc.dtype == jnp.float32
    assert bool(jnp.all(acc == ref))

    # --- Test 2: ragged B and C (no wrapper padding), masked final class tile,
    #     cross-tile first-occurrence tie-breaking. ---
    B2, C2 = 37, 300
    logits2 = jax.random.normal(k3, (B2, C2), dtype=jnp.float32)
    row_max = jnp.max(logits2, axis=1) + 1.0
    logits2 = logits2.at[:, 5].set(row_max)     # duplicate max in class tile 0
    logits2 = logits2.at[:, 200].set(row_max)   # ... and in class tile 1
    y2 = jax.random.randint(k4, (B2,), 0, C2, dtype=jnp.int32)
    y2 = y2.at[0].set(5).at[1].set(200)         # definite hit, tie-break miss

    acc2 = metric_classification(logits2, y2, min_pallas_elems=0,
                                 block_b=16, block_c=128)
    acc2 = jax.block_until_ready(acc2)
    ref2 = (jnp.argmax(logits2, axis=1) == y2).astype(jnp.float32)
    assert acc2.shape == (B2,) and bool(jnp.all(acc2 == ref2))

    # --- Test 3: bf16 native-dtype compute path. ---
    B3, C3 = 16, 256
    logits3 = jax.random.normal(k5, (B3, C3), dtype=jnp.float32).astype(jnp.bfloat16)
    y3 = jax.random.randint(k2, (B3,), 0, C3, dtype=jnp.int32)
    acc3 = metric_classification(logits3, y3, min_pallas_elems=0)
    acc3 = jax.block_until_ready(acc3)
    ref3 = (jnp.argmax(logits3, axis=1) == y3).astype(jnp.float32)
    assert bool(jnp.all(acc3 == ref3))

    # --- Test 4: small-problem bypass path (plain XLA). ---
    acc4 = metric_classification(logits, y)     # default threshold -> bypass
    acc4 = jax.block_until_ready(acc4)
    assert bool(jnp.all(acc4 == ref))

    print("KERNEL_OK")
</pallas_src>

<mosaic_0001>
module attributes {stable_mosaic.version = 11 : i64} {
  func.func @_metric_kernel(%arg0: i32, %arg1: i32, %arg2: memref<8x16xf32, #tpu.memory_space<vmem>>, %arg3: memref<8x1xi32, #tpu.memory_space<vmem>>, %arg4: memref<8x1xf32, #tpu.memory_space<vmem>>, %arg5: memref<8x1xf32, #tpu.memory_space<vmem>>, %arg6: memref<8x1xi32, #tpu.memory_space<vmem>>) attributes {dimension_semantics = [#tpu.dimension_semantics<parallel>, #tpu.dimension_semantics<arbitrary>], iteration_bounds = array<i64: 1, 1>, scalar_prefetch = 0 : i64, scratch_operands = 2 : i64, tpu.core_type = #tpu.core_type<tc>, window_params = [{transform_indices = @transform_0, window_bounds = array<i64: 8, 16>}, {transform_indices = @transform_1, window_bounds = array<i64: 8, 1>}, {transform_indices = @transform_2, window_bounds = array<i64: 8, 1>}]} {
    %c0_i32 = arith.constant 0 : i32
    %0 = arith.cmpi eq, %arg1, %c0_i32 : i32
    %1 = arith.extui %0 : i1 to i32
    %c0_i32_0 = arith.constant 0 : i32
    %2 = arith.cmpi ne, %1, %c0_i32_0 : i32
    scf.if %2 {
      %cst_15 = arith.constant 0xFF800000 : f32
      %33 = vector.broadcast %cst_15 : f32 to vector<8x1xf32>
      %c0_16 = arith.constant 0 : index
      %c0_17 = arith.constant 0 : index
      %34 = vector.load %arg5[%c0_16, %c0_17] : memref<8x1xf32, #tpu.memory_space<vmem>>, vector<8x1xf32>
      tpu.vector_store %arg5[%c0_16, %c0_17], %33 {strides = array<i32>} : memref<8x1xf32, #tpu.memory_space<vmem>>, vector<8x1xf32>,
      %c2147483647_i32_18 = arith.constant 2147483647 : i32
      %35 = vector.broadcast %c2147483647_i32_18 : i32 to vector<8x1xi32>
      %c0_19 = arith.constant 0 : index
      %c0_20 = arith.constant 0 : index
      %36 = vector.load %arg6[%c0_19, %c0_20] : memref<8x1xi32, #tpu.memory_space<vmem>>, vector<8x1xi32>
      tpu.vector_store %arg6[%c0_19, %c0_20], %35 {strides = array<i32>} : memref<8x1xi32, #tpu.memory_space<vmem>>, vector<8x1xi32>,
    } else {
    }
    %c0 = arith.constant 0 : index
    %c0_1 = arith.constant 0 : index
    %3 = vector.load %arg2[%c0, %c0_1] : memref<8x16xf32, #tpu.memory_space<vmem>>, vector<8x16xf32>
    %4 = tpu.iota {dimensions = array<i32: 1>} : vector<8x16xi32>
    %cst = arith.constant dense<0xFF800000> : vector<8xf32>
    %5 = vector.multi_reduction <maximumf>, %3, %cst [1] : vector<8x16xf32> to vector<8xf32>
    %6 = vector.shape_cast %5 : vector<8xf32> to vector<8x1xf32>
    %7 = vector.broadcast %6 : vector<8x1xf32> to vector<8x16xf32>
    %8 = arith.cmpf oeq, %3, %7 : vector<8x16xf32>
    %c2147483647_i32 = arith.constant 2147483647 : i32
    %9 = vector.broadcast %c2147483647_i32 : i32 to vector<8x16xi32>
    %10 = arith.select %8, %4, %9 : vector<8x16xi1>, vector<8x16xi32>
    %cst_2 = arith.constant dense<2147483647> : vector<8xi32>
    %11 = vector.multi_reduction <minsi>, %10, %cst_2 [1] : vector<8x16xi32> to vector<8xi32>
    %12 = vector.shape_cast %11 : vector<8xi32> to vector<8x1xi32>
    %c2147483647_i32_3 = arith.constant 2147483647 : i32
    %13 = vector.broadcast %c2147483647_i32_3 : i32 to vector<8x1xi32>
    %14 = arith.cmpi eq, %12, %13 : vector<8x1xi32>
    %c16_i32 = arith.constant 16 : i32
    %15 = arith.muli %arg1, %c16_i32 : i32
    %16 = vector.broadcast %15 : i32 to vector<8x1xi32>
    %17 = arith.addi %12, %16 : vector<8x1xi32>
    %c2147483647_i32_4 = arith.constant 2147483647 : i32
    %18 = vector.broadcast %c2147483647_i32_4 : i32 to vector<8x1xi32>
    %19 = arith.select %14, %18, %17 : vector<8x1xi1>, vector<8x1xi32>
    %c0_5 = arith.constant 0 : index
    %c0_6 = arith.constant 0 : index
    %20 = vector.load %arg5[%c0_5, %c0_6] : memref<8x1xf32, #tpu.memory_space<vmem>>, vector<8x1xf32>
    %c0_7 = arith.constant 0 : index
    %c0_8 = arith.constant 0 : index
    %21 = vector.load %arg6[%c0_7, %c0_8] : memref<8x1xi32, #tpu.memory_space<vmem>>, vector<8x1xi32>
    %22 = arith.cmpf ogt, %6, %20 : vector<8x1xf32>
    %23 = arith.cmpf oeq, %6, %20 : vector<8x1xf32>
    %24 = arith.maximumf %20, %6 : vector<8x1xf32>
    %c0_9 = arith.constant 0 : index
    %c0_10 = arith.constant 0 : index
    %25 = vector.load %arg5[%c0_9, %c0_10] : memref<8x1xf32, #tpu.memory_space<vmem>>, vector<8x1xf32>
    tpu.vector_store %arg5[%c0_9, %c0_10], %24 {strides = array<i32>} : memref<8x1xf32, #tpu.memory_space<vmem>>, vector<8x1xf32>,
    %26 = arith.minsi %21, %19 : vector<8x1xi32>
    %27 = arith.select %23, %26, %21 : vector<8x1xi1>, vector<8x1xi32>
    %28 = arith.select %22, %19, %27 : vector<8x1xi1>, vector<8x1xi32>
    %c0_11 = arith.constant 0 : index
    %c0_12 = arith.constant 0 : index
    %29 = vector.load %arg6[%c0_11, %c0_12] : memref<8x1xi32, #tpu.memory_space<vmem>>, vector<8x1xi32>
    tpu.vector_store %arg6[%c0_11, %c0_12], %28 {strides = array<i32>} : memref<8x1xi32, #tpu.memory_space<vmem>>, vector<8x1xi32>,
    %c0_i32_13 = arith.constant 0 : i32
    %30 = arith.cmpi eq, %arg1, %c0_i32_13 : i32
    %31 = arith.extui %30 : i1 to i32
    %c0_i32_14 = arith.constant 0 : i32
    %32 = arith.cmpi ne, %31, %c0_i32_14 : i32
    scf.if %32 {
      %c0_15 = arith.constant 0 : index
      %c0_16 = arith.constant 0 : index
      %33 = vector.load %arg6[%c0_15, %c0_16] : memref<8x1xi32, #tpu.memory_space<vmem>>, vector<8x1xi32>
      %c0_17 = arith.constant 0 : index
      %c0_18 = arith.constant 0 : index
      %34 = vector.load %arg3[%c0_17, %c0_18] : memref<8x1xi32, #tpu.memory_space<vmem>>, vector<8x1xi32>
      %35 = arith.cmpi eq, %33, %34 : vector<8x1xi32>
      %36 = arith.extui %35 : vector<8x1xi1> to vector<8x1xi32>
      %37 = arith.sitofp %36 : vector<8x1xi32> to vector<8x1xf32>
      %c0_19 = arith.constant 0 : index
      %c0_20 = arith.constant 0 : index
      %38 = vector.load %arg4[%c0_19, %c0_20] : memref<8x1xf32, #tpu.memory_space<vmem>>, vector<8x1xf32>
      tpu.vector_store %arg4[%c0_19, %c0_20], %37 {strides = array<i32>} : memref<8x1xf32, #tpu.memory_space<vmem>>, vector<8x1xf32>,
    } else {
    }
    return
  }
  func.func @transform_0(%arg0: i32, %arg1: i32) -> (i32, i32) {
    %c0_i32 = arith.constant 0 : i32
    return %arg0, %arg1 : i32, i32
  }
  func.func @transform_1(%arg0: i32, %arg1: i32) -> (i32, i32) {
    %c0_i32 = arith.constant 0 : i32
    %c0_i32_0 = arith.constant 0 : i32
    return %arg0, %c0_i32 : i32, i32
  }
  func.func @transform_2(%arg0: i32, %arg1: i32) -> (i32, i32) {
    %c0_i32 = arith.constant 0 : i32
    %c0_i32_0 = arith.constant 0 : i32
    return %arg0, %c0_i32 : i32, i32
  }
}

</mosaic_0001>

<llo_original>
// kernel: tpu_custom_call.1
$region0: #{tpu_custom_call.1}
  #allocation0 [shape = 'u32[]', space=smem, size = 0x4, offset = 0x4, fixed_abs, tag = 'smem constant byte address 0x4 - core index']
  #allocation1 [shape = 'u32[144,128]{1,0:T(1,128)}', space=vmem, size = 0x12000, scoped, tag = 'internal scratch']
  #allocation2 [shape = 'f32[8,1]{1,0:T(8,128)}', space=vmem, size = 0x1000, scoped, tag = 'scratch operand']
  #allocation3 [shape = 's32[8,1]{1,0:T(8,128)}', space=vmem, size = 0x1000, scoped, tag = 'scratch operand']
  %s0 = inlined_call_operand.vmem [shape: f32[8,16], index: 0, kind: input, shape index: {}]
  %s1 = inlined_call_operand.vmem [shape: s32[8,1], index: 1, kind: input, shape index: {}]
  %s2 = inlined_call_operand.vmem [shape: f32[8,1], index: 2, kind: output, shape index: {}]
  %s3 = sld [smem:[#allocation0]]
  $region26: #{tpu_custom_call.1} parent=0
    _
  %s5 = ssub.s32 1, %s3
  %s6 = scalar_select 0, %s5, %s3
  // Predicated region
  $region2: #{tpu_custom_call.1} parent=0 // pred_check
    _
  $region3: #{tpu_custom_call.1} parent=0 // pred_check_branch
    %8 = sbr.rel (0) target = $region5
  $region4: #{tpu_custom_call.1} parent=0 // pred_region
    _
  $region5: #{tpu_custom_call.1} parent=0 // pred_fallthru
    _
  // Predicated region
  $region6: #{tpu_custom_call.1} parent=0 // pred_check
    _
  $region7: #{tpu_custom_call.1} parent=0 // pred_check_branch
    %10 = sbr.rel (0) target = $region9
  $region8: #{tpu_custom_call.1} parent=0 // pred_region
    _
  $region9: #{tpu_custom_call.1} parent=0 // pred_fallthru
    _
  %p11 = scmp.eq.s32.totalorder 0, 0
  // Predicated region
  $region10: #{tpu_custom_call.1} parent=0 // pred_check
    %p12 = pneg %p11
  $region11: #{tpu_custom_call.1} parent=0 // pred_check_branch
    %14 = sbr.rel (%p12) target = $region13
  $region12: #{tpu_custom_call.1} parent=0 // pred_region
    %vm15 = vcmask 7168
    %16 = vst.msk [vmem:[#allocation2] sm:$0xff] %vm15, -inf
    %17 = vst.msk [vmem:[#allocation3] sm:$0xff] %vm15, 2147483647
  $region13: #{tpu_custom_call.1} parent=0 // pred_fallthru
    _
  %v18 = vld [vmem:[%s0] sm:$0xff]
  %v19 = vlaneseq
  %v20 = vand.u32 %v19, 127
  %vm21 = vcmask 130048
  %v22 = vsel %vm21, %v18, -inf
  %23 = vmax.xlane.f32.xlu0 %v22
  %v24 = vpop.xlane.xlu0 %23
  %vm25 = vcmp.eq.f32.partialorder %v18, %v24
  %v26 = vsel %vm25, %v20, 2147483647
  %v27 = vsel %vm21, %v26, 2147483647
  %v28 = vand.u32 %v27, 65535
  %v29 = vshra.s32 %v27, 16
  %v30 = vcvt.s32.f32 %v28
  %v31 = vcvt.s32.f32 %v29
  %32 = vmin.xlane.f32.xlu0 %v31
  %v33 = vpop.xlane.xlu0 %32
  %vm34 = vcmp.eq.f32.partialorder %v31, %v33
  %v35 = vsel %vm34, %v30, inf
  %36 = vmin.xlane.f32.xlu0 %v35
  %v37 = vpop.xlane.xlu0 %36
  %v38 = vcvt.f32.s32 %v37
  %v39 = vcvt.f32.s32 %v33
  %v40 = vshll.u32 %v39, 16
  %v41 = vadd.s32 %v40, %v38
  %vm42 = vcmp.eq.s32.totalorder %v41, 2147483647
  %s43 = smul.u32 0, 16
  %v44 = vstv %s43
  %v45 = vadd.s32 %v41, %v44
  %v46 = vsel %vm42, 2147483647, %v45
  %v47 = vld [vmem:[#allocation2] sm:$0xff]
  %v48 = vld [vmem:[#allocation3] sm:$0xff]
  %vm49 = vcmp.gt.f32.partialorder %v24, %v47
  %vm50 = vcmp.eq.f32.partialorder %v24, %v47
  %v51 = vmax.f32 %v47, %v24
  %vm52 = vcmask 7168
  %53 = vst.msk [vmem:[#allocation2] sm:$0xff] %vm52, %v51
  %vm54 = vcmp.lt.s32.totalorder %v48, %v46
  %v55 = vsel %vm54, %v48, %v46
  %v56 = vsel %vm50, %v55, %v48
  %v57 = vsel %vm49, %v46, %v56
  %58 = vst.msk [vmem:[#allocation3] sm:$0xff] %vm52, %v57
  // Predicated region
  $region14: #{tpu_custom_call.1} parent=0 // pred_check
    %p59 = pneg %p11
  $region15: #{tpu_custom_call.1} parent=0 // pred_check_branch
    %61 = sbr.rel (%p59) target = $region17
  $region16: #{tpu_custom_call.1} parent=0 // pred_region
    %v62 = vld [vmem:[#allocation3] sm:$0xff]
    %v63 = vld [vmem:[%s1] sm:$0xff]
    %vm64 = vcmp.eq.s32.totalorder %v62, %v63
    %v65 = vsel %vm64, 1, 0
    %v66 = vcvt.s32.f32 %v65
    %67 = vst.msk [vmem:[%s2] sm:$0xff] %vm52, %v66
  $region17: #{tpu_custom_call.1} parent=0 // pred_fallthru
    _
  // Predicated region
  $region18: #{tpu_custom_call.1} parent=0 // pred_check
    _
  $region19: #{tpu_custom_call.1} parent=0 // pred_check_branch
    %69 = sbr.rel (0) target = $region21
  $region20: #{tpu_custom_call.1} parent=0 // pred_region
    _
  $region21: #{tpu_custom_call.1} parent=0 // pred_fallthru
    _
  // Predicated region
  $region22: #{tpu_custom_call.1} parent=0 // pred_check
    _
  $region23: #{tpu_custom_call.1} parent=0 // pred_check_branch
    %71 = sbr.rel (0) target = $region25
  $region24: #{tpu_custom_call.1} parent=0 // pred_region
    _
  $region25: #{tpu_custom_call.1} parent=0 // pred_fallthru
    _

</llo_original>
